<compile_context>
chip_gen: v6e
topology: v6e:2x2x1
jax: 0.10.0
libtpu: 0.0.40
codegen_flags: <defaults>
</compile_context>

<pallas_src>
import functools

import jax
import jax.numpy as jnp
from jax.experimental import pallas as pl
from jax.experimental.pallas import tpu as pltpu


def _round_up(x, m):
    return (x + m - 1) // m * m


def _cdiv(a, b):
    return (a + b - 1) // b


def _patch_embed_kernel(x_ref, w_ref, b_ref, o_ref):
    # x_ref: (TM, Kp) flattened-patch tile (streamed over M)
    # w_ref: (Kp, TE) projection weight tile (resident across the inner M loop)
    # b_ref: (1, TE)  bias tile (f32)
    # o_ref: (TM, TE)
    acc = jnp.dot(x_ref[...], w_ref[...], preferred_element_type=jnp.float32)
    # Bias add + downcast ride for free on the VPU under MXU/DMA slack (keep in-kernel).
    o_ref[...] = (acc + b_ref[...]).astype(o_ref.dtype)


# Safe across generations: well under v5e/v6e physical VMEM (128 MiB) and v7x (64 MiB/TC).
_DEFAULT_VMEM_LIMIT = 40 * 1024 * 1024


def patch_embedding(x, weight, bias, patch_size, *, tile_m=None, tile_e=None,
                    compute_dtype=None, out_dtype=None,
                    vmem_limit_bytes=_DEFAULT_VMEM_LIMIT):
    """ViT patch embedding.

    x:      (B, C, H, W)   NCHW, matching torch
    weight: (E, C, P, P)   torch Conv2d weight layout
    bias:   (E,)
    Returns (B, n_patches, E) == proj(x).flatten(2).transpose(1, 2).
    """
    B, C, H, W = x.shape
    E = weight.shape[0]
    P = patch_size
    nh, nw = H // P, W // P
    n_patches = nh * nw

    M = B * n_patches
    K = C * P * P
    K_pad = _round_up(K, 128)
    E_pad = _round_up(E, 128)

    if out_dtype is None:
        out_dtype = x.dtype

    # Cast BEFORE the im2col transpose so the (fused) transpose moves half the bytes.
    if compute_dtype is not None:
        x = x.astype(compute_dtype)
        weight = weight.astype(compute_dtype)

    # ---- im2col: (B,C,H,W) -> (M, K); K flattened as (C, kh, kw) to match torch's
    # (E, C, kh, kw) weight layout. With allow_input_fusion below, XLA fuses this
    # producer chain into the pallas_call input read instead of writing it to HBM.
    xp = x.reshape(B, C, nh, P, nw, P)
    xp = jnp.transpose(xp, (0, 2, 4, 1, 3, 5))
    patches = xp.reshape(M, K)

    w_mat = weight.reshape(E, K).T                      # (K, E)
    b_mat = bias.astype(jnp.float32).reshape(1, E)      # bias added in f32 in-kernel

    if K_pad != K:                                      # lane-dense x loads / aligned weights
        patches = jnp.pad(patches, ((0, 0), (0, K_pad - K)))
        w_mat = jnp.pad(w_mat, ((0, K_pad - K), (0, 0)))
    if E_pad != E:                                      # lane-dense output stores
        w_mat = jnp.pad(w_mat, ((0, 0), (0, E_pad - E)))
        b_mat = jnp.pad(b_mat, ((0, 0), (0, E_pad - E)))

    # ---- tiling, budgeted against the scoped-VMEM limit (double-buffered by Pallas) ----
    in_sz = patches.dtype.itemsize
    w_sz = w_mat.dtype.itemsize
    out_sz = jnp.dtype(out_dtype).itemsize
    budget = int(0.75 * vmem_limit_bytes)

    # E tile: keep the resident (double-buffered) weight tile to ~1/3 of the budget so
    # very wide projections don't blow VMEM while retaining E-outer residency.
    if tile_e is None:
        te = E_pad
        while te > 128 and 2 * K_pad * te * w_sz > budget // 3:
            te = _round_up(te // 2, 128)
    else:
        te = min(_round_up(tile_e, 128), E_pad)

    # M tile: fit double-buffered patches + output (+ resident weight/bias) in budget.
    fixed = 2 * K_pad * te * w_sz + 2 * te * 4
    per_row = 2 * (K_pad * in_sz + te * out_sz)
    if tile_m is None:
        tm = max(8, min(2048, (budget - fixed) // per_row))
    else:
        tm = max(8, tile_m)
    tm = max(8, (tm // 8) * 8)                          # sublane multiple
    if tm >= M:
        tm = M                                          # full-dim block is always legal

    grid_e = _cdiv(E_pad, te)
    grid_m = _cdiv(M, tm)
    # Keep >=2 grid tiles so the "parallel" axes actually shard across v7x's 2 TensorCores.
    if grid_e * grid_m == 1 and M >= 16:
        tm = _round_up(_cdiv(M, 2), 8)
        grid_m = _cdiv(M, tm)

    grid = (grid_e, grid_m)   # E outer -> weight/bias stay resident over the inner M loop

    cost = pl.CostEstimate(   # advisory; excludes the fused im2col producer
        flops=2 * M * K_pad * E_pad,
        transcendentals=0,
        bytes_accessed=(M * K_pad * in_sz + K_pad * E_pad * w_sz
                        + E_pad * 4 + M * E_pad * out_sz),
    )

    out = pl.pallas_call(
        _patch_embed_kernel,
        out_shape=jax.ShapeDtypeStruct((M, E_pad), out_dtype),
        grid_spec=pltpu.PrefetchScalarGridSpec(
            num_scalar_prefetch=0,
            grid=grid,
            in_specs=[
                pl.BlockSpec((tm, K_pad), lambda e, m: (m, 0)),   # streamed over M
                pl.BlockSpec((K_pad, te), lambda e, m: (0, e)),   # resident across m
                pl.BlockSpec((1, te), lambda e, m: (0, e)),       # resident across m
            ],
            out_specs=pl.BlockSpec((tm, te), lambda e, m: (m, e)),
        ),
        compiler_params=pltpu.CompilerParams(
            dimension_semantics=("parallel", "parallel"),
            vmem_limit_bytes=vmem_limit_bytes,
            # Fuse the im2col reshape/transpose (+cast, +pad) producer into the pallas
            # input read instead of materializing `patches` in HBM.
            allow_input_fusion=[True, False, False],
        ),
        cost_estimate=cost,
    )(patches, w_mat, b_mat)

    if E_pad != E:
        out = out[:, :E]
    return out.reshape(B, n_patches, E)


if __name__ == "__main__":
    # Small shapes consistent with the module: img_size=16, patch_size=4,
    # in_channels=4, embed_dim=32  ->  n_patches = (16 // 4) ** 2 = 16.
    img_size, patch_size, in_channels, embed_dim = 16, 4, 4, 32
    batch = 2

    key = jax.random.PRNGKey(0)
    kx, kw, kb = jax.random.split(key, 3)

    x = jax.random.normal(kx, (batch, in_channels, img_size, img_size), dtype=jnp.float32)
    weight = 0.02 * jax.random.normal(
        kw, (embed_dim, in_channels, patch_size, patch_size), dtype=jnp.float32)
    bias = 0.01 * jax.random.normal(kb, (embed_dim,), dtype=jnp.float32)

    # jit so the im2col producer sits in the same XLA computation as the pallas_call
    # (lets allow_input_fusion remove the HBM round-trip). tile_m=8 so even the toy
    # problem exercises a multi-step, pipelined grid.
    fwd = jax.jit(functools.partial(patch_embedding, patch_size=patch_size, tile_m=8))
    out = jax.block_until_ready(fwd(x, weight, bias))

    # Reference: same conv-as-matmul math via XLA's conv.
    nh = nw = img_size // patch_size
    ref = jax.lax.conv_general_dilated(
        x, weight, window_strides=(patch_size, patch_size), padding="VALID",
        dimension_numbers=("NCHW", "OIHW", "NCHW"),
    ) + bias.reshape(1, embed_dim, 1, 1)
    ref = ref.reshape(batch, embed_dim, nh * nw).transpose(0, 2, 1)

    assert out.shape == (batch, nh * nw, embed_dim)
    assert jnp.allclose(out, ref, atol=1e-4, rtol=1e-4)

    # bf16 compute + bf16 output path (f32 MXU accumulation) — looser tolerance.
    fwd_bf16 = jax.jit(functools.partial(
        patch_embedding, patch_size=patch_size, tile_m=8,
        compute_dtype=jnp.bfloat16, out_dtype=jnp.bfloat16))
    out_bf16 = jax.block_until_ready(fwd_bf16(x, weight, bias))
    assert out_bf16.dtype == jnp.bfloat16
    assert jnp.allclose(out_bf16.astype(jnp.float32), ref, atol=5e-2, rtol=5e-2)

    # Auto-tiled path (no explicit tile_m): exercises the VMEM-budgeted tile selection.
    out_auto = jax.block_until_ready(
        jax.jit(functools.partial(patch_embedding, patch_size=patch_size))(x, weight, bias))
    assert jnp.allclose(out_auto, ref, atol=1e-4, rtol=1e-4)

    print("KERNEL_OK")
</pallas_src>

<mosaic_0001>
module attributes {stable_mosaic.version = 11 : i64} {
  func.func @_patch_embed_kernel(%arg0: i32, %arg1: i32, %arg2: memref<8x128xf32, #tpu.memory_space<vmem>>, %arg3: memref<128x128xf32, #tpu.memory_space<vmem>>, %arg4: memref<1x128xf32, #tpu.memory_space<vmem>>, %arg5: memref<8x128xf32, #tpu.memory_space<vmem>>) attributes {dimension_semantics = [#tpu.dimension_semantics<parallel>, #tpu.dimension_semantics<parallel>], iteration_bounds = array<i64: 1, 4>, scalar_prefetch = 0 : i64, scratch_operands = 0 : i64, tpu.core_type = #tpu.core_type<tc>, window_params = [{transform_indices = @transform_0, window_bounds = array<i64: 8, 128>}, {transform_indices = @transform_1, window_bounds = array<i64: 128, 128>}, {transform_indices = @transform_2, window_bounds = array<i64: 1, 128>}, {transform_indices = @transform_3, window_bounds = array<i64: 8, 128>}]} {
    %c0 = arith.constant 0 : index
    %c0_0 = arith.constant 0 : index
    %0 = vector.load %arg2[%c0, %c0_0] : memref<8x128xf32, #tpu.memory_space<vmem>>, vector<8x128xf32>
    %c0_1 = arith.constant 0 : index
    %c0_2 = arith.constant 0 : index
    %1 = vector.load %arg3[%c0_1, %c0_2] : memref<128x128xf32, #tpu.memory_space<vmem>>, vector<128x128xf32>
    %cst = arith.constant dense<0.000000e+00> : vector<8x128xf32>
    %2 = tpu.matmul %0, %1, %cst {dimension_numbers = #tpu.dot_dimension_numbers<[1], [0], [0], [1], [0, 0, 1, 1], [], []>} : vector<8x128xf32>, vector<128x128xf32>, vector<8x128xf32> -> vector<8x128xf32>
    %c0_3 = arith.constant 0 : index
    %c0_4 = arith.constant 0 : index
    %3 = vector.load %arg4[%c0_3, %c0_4] : memref<1x128xf32, #tpu.memory_space<vmem>>, vector<1x128xf32>
    %4 = vector.broadcast %3 : vector<1x128xf32> to vector<8x128xf32>
    %5 = arith.addf %2, %4 : vector<8x128xf32>
    %c0_5 = arith.constant 0 : index
    %c0_6 = arith.constant 0 : index
    %6 = vector.load %arg5[%c0_5, %c0_6] : memref<8x128xf32, #tpu.memory_space<vmem>>, vector<8x128xf32>
    tpu.vector_store %arg5[%c0_5, %c0_6], %5 {strides = array<i32>} : memref<8x128xf32, #tpu.memory_space<vmem>>, vector<8x128xf32>,
    return
  }
  func.func @transform_0(%arg0: i32, %arg1: i32) -> (i32, i32) {
    %c0_i32 = arith.constant 0 : i32
    %c0_i32_0 = arith.constant 0 : i32
    return %arg1, %c0_i32 : i32, i32
  }
  func.func @transform_1(%arg0: i32, %arg1: i32) -> (i32, i32) {
    %c0_i32 = arith.constant 0 : i32
    %c0_i32_0 = arith.constant 0 : i32
    return %c0_i32, %arg0 : i32, i32
  }
  func.func @transform_2(%arg0: i32, %arg1: i32) -> (i32, i32) {
    %c0_i32 = arith.constant 0 : i32
    %c0_i32_0 = arith.constant 0 : i32
    return %c0_i32, %arg0 : i32, i32
  }
  func.func @transform_3(%arg0: i32, %arg1: i32) -> (i32, i32) {
    %c0_i32 = arith.constant 0 : i32
    return %arg1, %arg0 : i32, i32
  }
}

</mosaic_0001>

<llo_original>
// kernel: patch_embedding.2
$region0: #{patch_embedding.2}
  #allocation0 [shape = 'u32[]', space=smem, size = 0x4, offset = 0x4, fixed_abs, tag = 'smem constant byte address 0x4 - core index']
  #allocation1 [shape = 'u32[144,128]{1,0:T(1,128)}', space=vmem, size = 0x12000, scoped, tag = 'internal scratch']
  #allocation2 [shape = 'u32[2048]{0}', space=vmem, size = 0x2000, scoped, tag = 'scoped memory for patch_embedding.2']
  #allocation3 [shape = 'u32[2048]{0}', space=vmem, size = 0x2000, scoped, tag = 'scoped memory for patch_embedding.2']
  #allocation4 [shape = 'u32[2048]{0}', space=vmem, size = 0x2000, scoped, tag = 'scoped memory for patch_embedding.2']
  #allocation5 [shape = 'u32[2048]{0}', space=vmem, size = 0x2000, scoped, tag = 'scoped memory for patch_embedding.2']
  #allocation6 [shape = 'u32[2048]{0}', space=vmem, size = 0x2000, scoped, tag = 'scoped memory for patch_embedding.2']
  %s0 = inlined_call_operand.vmem [shape: f32[128,128], index: 0, kind: input, shape index: {}]
  %s1 = inlined_call_operand.vmem [shape: f32[1,128], index: 1, kind: input, shape index: {}]
  %s2 = inlined_call_operand.vmem [shape: f32[32,64], index: 2, kind: input, shape index: {}]
  %s3 = inlined_call_operand.<no memory space> [shape: f32[], index: 3, kind: input, shape index: {}]
  %s4 = inlined_call_operand.hbm [shape: f32[32,128], index: 4, kind: output, shape index: {}]
  %s5 = sld [smem:[#allocation0]]
  $region45: #{patch_embedding.2} parent=0
    _
  %s7 = ssub.s32 1, %s5
  %s8 = scalar_select 0, %s7, %s5
  %v9 = vstv %s3
  $region1: #{patch_embedding.2} parent=0
    #allocation7 [shape = 'u8[8192]{0}', space=vmem, size = 0x2000, scoped, tag = 'output window, operand 0']
    #allocation8 [shape = 's32[2]{0}', space=sflag, size = 0x8, scoped, tag = 'scoped memory for patch_embedding.2']
    %10 = vsyncpa [#allocation8], 0
    %s11 = scalar_lea.sflag [#allocation8], 1
    %12 = vsyncpa %s11, 0
    loop: start=0, step=1, limit=6
    $region2: #{patch_embedding.2} parent=1 // loop_pre_header
      _
    $region3: #{patch_embedding.2} parent=1 // loop_header
      %s14 = sphi 0, %s18
      %p15 = scmp.ge.s32.totalorder %s14, 6
      %s21 = sphi 0, %s33
      %s22 = sphi 0, %s29
      %s23 = sphi 0, %s21
      %s24 = sphi 0, %s22
      %s25 = sphi 0, %s23
      %s26 = sphi 0, %s24
      %s36 = sphi 0, %s38
      %s39 = sphi 0, %s36
      %s40 = sphi 0, %s39
      %s56 = sphi 0, %s40
      %s62 = sphi 0, %s64
      %s65 = sphi 0, %s62
      %s66 = sphi 0, %s65
      %s82 = sphi 0, %s66
      %s88 = sphi 0, %s90
      %s91 = sphi 0, %s88
      %s92 = sphi 0, %s91
      %s108 = sphi 0, %s92
      %s116 = sphi 0, %s118
      %s119 = sphi 0, %s116
      %s120 = sphi 0, %s119
      %s136 = sphi 0, %s120
    $region4: #{patch_embedding.2} parent=1 // loop_header_branch
      %17 = sbr.rel (%p15) target = $region8
    $region5: #{patch_embedding.2} parent=1 // loop_body
      %s19 = ssub.s32 %s14, 1
      %s20 = ssub.s32 %s14, 2
      %s27 = sadd.s32 1, %s22
      %p28 = scmp.ge.s32.totalorder %s27, 4
      %s29 = scalar_select %p28, 0, %s27
      %s30 = sadd.s32 1, %s21
      %s31 = scalar_select %p28, %s30, %s21
      %p32 = scmp.ge.s32.totalorder %s31, 1
      %s33 = scalar_select %p32, 0, %s31
      %s34 = ssub.s32 %s22, %s29
      %p35 = scmp.eq.s32.totalorder %s34, 0
      %s37 = sadd.s32 %s36, 1
      %s38 = scalar_select %p35, %s36, %s37
      %p41 = pneg %p35
      %p42 = scmp.eq.s32.totalorder %s14, 3
      %p43 = por %p41, %p42
      %p44 = scmp.ne.s32.totalorder %s36, %s39
      %p45 = scmp.eq.s32.totalorder %s14, 0
      %p46 = por %p44, %p45
      %p47 = scmp.ne.s32.totalorder %s36, %s39
      %p48 = scmp.eq.s32.totalorder %s19, 3
      %p49 = por %p47, %p48
      %p50 = scmp.ne.s32.totalorder %s39, %s40
      %p51 = scmp.eq.s32.totalorder %s19, 0
      %p52 = por %p50, %p51
      %p53 = scmp.ne.s32.totalorder %s39, %s40
      %p54 = scmp.eq.s32.totalorder %s20, 3
      %p55 = por %p53, %p54
      %p57 = scmp.ne.s32.totalorder %s40, %s56
      %p58 = scmp.eq.s32.totalorder %s20, 0
      %p59 = por %p57, %p58
      %s60 = ssub.s32 %s21, %s33
      %p61 = scmp.eq.s32.totalorder %s60, 0
      %s63 = sadd.s32 %s62, 1
      %s64 = scalar_select %p61, %s62, %s63
      %p67 = pneg %p61
      %p68 = scmp.eq.s32.totalorder %s14, 3
      %p69 = por %p67, %p68
      %p70 = scmp.ne.s32.totalorder %s62, %s65
      %p71 = scmp.eq.s32.totalorder %s14, 0
      %p72 = por %p70, %p71
      %p73 = scmp.ne.s32.totalorder %s62, %s65
      %p74 = scmp.eq.s32.totalorder %s19, 3
      %p75 = por %p73, %p74
      %p76 = scmp.ne.s32.totalorder %s65, %s66
      %p77 = scmp.eq.s32.totalorder %s19, 0
      %p78 = por %p76, %p77
      %p79 = scmp.ne.s32.totalorder %s65, %s66
      %p80 = scmp.eq.s32.totalorder %s20, 3
      %p81 = por %p79, %p80
      %p83 = scmp.ne.s32.totalorder %s66, %s82
      %p84 = scmp.eq.s32.totalorder %s20, 0
      %p85 = por %p83, %p84
      %s86 = ssub.s32 %s21, %s33
      %p87 = scmp.eq.s32.totalorder %s86, 0
      %s89 = sadd.s32 %s88, 1
      %s90 = scalar_select %p87, %s88, %s89
      %p93 = pneg %p87
      %p94 = scmp.eq.s32.totalorder %s14, 3
      %p95 = por %p93, %p94
      %p96 = scmp.ne.s32.totalorder %s88, %s91
      %p97 = scmp.eq.s32.totalorder %s14, 0
      %p98 = por %p96, %p97
      %p99 = scmp.ne.s32.totalorder %s88, %s91
      %p100 = scmp.eq.s32.totalorder %s19, 3
      %p101 = por %p99, %p100
      %p102 = scmp.ne.s32.totalorder %s91, %s92
      %p103 = scmp.eq.s32.totalorder %s19, 0
      %p104 = por %p102, %p103
      %p105 = scmp.ne.s32.totalorder %s91, %s92
      %p106 = scmp.eq.s32.totalorder %s20, 3
      %p107 = por %p105, %p106
      %p109 = scmp.ne.s32.totalorder %s92, %s108
      %p110 = scmp.eq.s32.totalorder %s20, 0
      %p111 = por %p109, %p110
      %s112 = ssub.s32 %s22, %s29
      %s113 = ssub.s32 %s21, %s33
      %s114 = sor.u32 %s112, %s113
      %p115 = scmp.eq.s32.totalorder %s114, 0
      %s117 = sadd.s32 %s116, 1
      %s118 = scalar_select %p115, %s116, %s117
      %p121 = pneg %p115
      %p122 = scmp.eq.s32.totalorder %s14, 3
      %p123 = por %p121, %p122
      %p124 = scmp.ne.s32.totalorder %s116, %s119
      %p125 = scmp.eq.s32.totalorder %s14, 0
      %p126 = por %p124, %p125
      %p127 = scmp.ne.s32.totalorder %s116, %s119
      %p128 = scmp.eq.s32.totalorder %s19, 3
      %p129 = por %p127, %p128
      %p130 = scmp.ne.s32.totalorder %s119, %s120
      %p131 = scmp.eq.s32.totalorder %s19, 0
      %p132 = por %p130, %p131
      %p133 = scmp.ne.s32.totalorder %s119, %s120
      %p134 = scmp.eq.s32.totalorder %s20, 3
      %p135 = por %p133, %p134
      %p137 = scmp.ne.s32.totalorder %s120, %s136
      %p138 = scmp.eq.s32.totalorder %s20, 0
      %p139 = por %p137, %p138
      %p140 = scmp.le.s32.totalorder 1, %s14
      %p141 = scmp.lt.s32.totalorder %s14, 5
      %p142 = pnand %p140, %p141
      %p143 = pneg %p142
      // Predicated region
      $region9: #{patch_embedding.2} parent=5 // pred_check
        _
      $region10: #{patch_embedding.2} parent=5 // pred_check_branch
        %145 = sbr.rel (%p142) target = $region12
      $region11: #{patch_embedding.2} parent=5 // pred_region
        %s146 = ssub.s32 %s14, 1
        // Predicated region
        $region13: #{patch_embedding.2} parent=11 // pred_check
          %p147 = pneg %p78
        $region14: #{patch_embedding.2} parent=11 // pred_check_branch
          %149 = sbr.rel (%p147) target = $region16
        $region15: #{patch_embedding.2} parent=11 // pred_region
          %p150 = scmp.lt.s32.totalorder %s23, 0
          %s151 = scalar_select %p150, %s23, 0
          %s152 = smul.addr %s151, 8
          %s153 = scalar_lea.vmem %s0, %s152
        $region16: #{patch_embedding.2} parent=11 // pred_fallthru
          _
        // Predicated region
        $region17: #{patch_embedding.2} parent=11 // pred_check
          %p154 = pneg %p104
        $region18: #{patch_embedding.2} parent=11 // pred_check_branch
          %156 = sbr.rel (%p154) target = $region20
        $region19: #{patch_embedding.2} parent=11 // pred_region
          %p157 = scmp.lt.s32.totalorder %s23, 0
          %s158 = scalar_select %p157, %s23, 0
          %s159 = scalar_lea.vmem %s1, %s158
        $region20: #{patch_embedding.2} parent=11 // pred_fallthru
          _
      $region12: #{patch_embedding.2} parent=5 // pred_fallthru
        _
      %p160 = scmp.lt.s32.totalorder %s14, 4
      // Predicated region
      $region21: #{patch_embedding.2} parent=5 // pred_check
        %p161 = pneg %p160
      $region22: #{patch_embedding.2} parent=5 // pred_check_branch
        %163 = sbr.rel (%p161) target = $region24
      $region23: #{patch_embedding.2} parent=5 // pred_region
        // Predicated region
        $region25: #{patch_embedding.2} parent=23 // pred_check
          %p164 = pneg %p46
        $region26: #{patch_embedding.2} parent=23 // pred_check_branch
          %166 = sbr.rel (%p164) target = $region28
        $region27: #{patch_embedding.2} parent=23 // pred_region
          %p167 = scmp.lt.s32.totalorder %s22, 3
          %s168 = scalar_select %p167, %s22, 3
          %s169 = smul.addr %s168, 8
          %s170 = scalar_lea.vmem %s2, %s169
        $region28: #{patch_embedding.2} parent=23 // pred_fallthru
          _
      $region24: #{patch_embedding.2} parent=5 // pred_fallthru
        _
      %p171 = scmp.le.s32.totalorder 1, %s14
      %p172 = scmp.lt.s32.totalorder %s14, 5
      %p173 = pnand %p171, %p172
      %p174 = pneg %p173
      // Predicated region
      $region29: #{patch_embedding.2} parent=5 // pred_check
        _
      $region30: #{patch_embedding.2} parent=5 // pred_check_branch
        %176 = sbr.rel (%p173) target = $region32
      $region31: #{patch_embedding.2} parent=5 // pred_region
        #allocation9 [shape = 'u8[4096]{0}', space=vmem, size = 0x1000, dematerialized = true, scoped, tag = 'FusionAdapter Buffer %fusion.1 = f32[32,128]{1,0:T(8,128)} fusion(%param_2.1, %param_3), kind=kLoop, calls=%fused_computation.2.clone, metadata={op_name="jit(patch_embedding)/jit(_pad)/pad" stack_frame_id=12}']
        %s177 = ssub.s32 %s14, 1
        %p178 = scmp.lt.s32.totalorder %s24, 3
        %s179 = scalar_select %p178, %s24, 3
        %s180 = smul.addr %s179, 8
        %s181 = scalar_lea.vmem %s2, %s180
        %p182 = pneg %p52
        %p183 = pneg %p49
        %p184 = scmp.lt.s32.totalorder %s23, 0
        %s185 = scalar_select %p184, %s23, 0
        %s186 = smul.addr %s185, 8
        %s187 = scalar_lea.vmem %s0, %s186
        %p188 = pneg %p78
        %p189 = pneg %p75
        %p190 = scmp.lt.s32.totalorder %s23, 0
        %s191 = scalar_select %p190, %s23, 0
        %s192 = scalar_lea.vmem %s1, %s191
        %p193 = pneg %p104
        %p194 = pneg %p101
        %p195 = pneg %p132
        %p196 = pneg %p129
        %s197 = sand.u32 %s119, 1
        %s198 = scalar_lea.sflag [#allocation8], %s197
        %s199 = sand.u32 %s119, 1
        %s200 = smul.addr %s199, 8
        %s201 = scalar_lea.vmem [#allocation7], %s200
        %p202 = scmp.lt.s32.totalorder %s24, 3
        %s203 = scalar_select %p202, %s24, 3
        %s204 = smul.addr %s203, 8
        %s205 = scalar_lea.vmem %s2, %s204
        %p206 = scmp.lt.s32.totalorder %s23, 0
        %s207 = scalar_select %p206, %s23, 0
        %s208 = smul.addr %s207, 8
        %s209 = scalar_lea.vmem %s0, %s208
        %p210 = scmp.lt.s32.totalorder %s23, 0
        %s211 = scalar_select %p210, %s23, 0
        %s212 = scalar_lea.vmem %s1, %s211
        %v213 = vld [vmem:[%s205] sm:$0xff]
        %v214 = vlaneseq
        %v215 = vand.u32 %v214, 127
        %vm217 = vcmp.lt.s32.totalorder %v215, 64
        %v218 = vsel %vm217, %v213, %v9
        %s220 = ssub.s32 256, 1
        %221 = vst [vmem:[#allocation9] sm:%s220] %v218
        %v222 = vld [vmem:[#allocation9] sm:$0xff]
        %v223 = vld [vmem:[%s209] sm:$0xff]
        %v224 = vld [vmem:[%s209 + $0x8] sm:$0xff]
        %v225 = vld [vmem:[%s209 + $0x10] sm:$0xff]
        %v226 = vld [vmem:[%s209 + $0x18] sm:$0xff]
        %v227 = vld [vmem:[%s209 + $0x20] sm:$0xff]
        %v228 = vld [vmem:[%s209 + $0x28] sm:$0xff]
        %v229 = vld [vmem:[%s209 + $0x30] sm:$0xff]
        %v230 = vld [vmem:[%s209 + $0x38] sm:$0xff]
        %v231 = vld [vmem:[%s209 + $0x40] sm:$0xff]
        %v232 = vld [vmem:[%s209 + $0x48] sm:$0xff]
        %v233 = vld [vmem:[%s209 + $0x50] sm:$0xff]
        %v234 = vld [vmem:[%s209 + $0x58] sm:$0xff]
        %v235 = vld [vmem:[%s209 + $0x60] sm:$0xff]
        %v236 = vld [vmem:[%s209 + $0x68] sm:$0xff]
        %v237 = vld [vmem:[%s209 + $0x70] sm:$0xff]
        %v238 = vld [vmem:[%s209 + $0x78] sm:$0xff]
        %v239 = vld [vmem:[%s212] sm:$0x1]
        %v241 = vlaneseq
        %v242 = vshrl.u32 %v241, 7
        %v243 = vsub.s32 0, %v242
        %v244 = vrot.slane %v239, %v243
        %246 = vmatprep.subr.mxu0 0.0
        %247 = vmatpush1.msra.mxu0 %v238
        %248 = vmatprep.subr.mxu0 0.0
        %249 = vmatpush1.msra.mxu0 %v237
        %250 = vmatprep.subr.mxu0 0.0
        %251 = vmatpush1.msra.mxu0 %v236
        %252 = vmatprep.subr.mxu0 0.0
        %253 = vmatpush1.msra.mxu0 %v235
        %254 = vmatprep.subr.mxu0 0.0
        %255 = vmatpush1.msra.mxu0 %v234
        %256 = vmatprep.subr.mxu0 0.0
        %257 = vmatpush1.msra.mxu0 %v233
        %258 = vmatprep.subr.mxu0 0.0
        %259 = vmatpush1.msra.mxu0 %v232
        %260 = vmatprep.subr.mxu0 0.0
        %261 = vmatpush1.msra.mxu0 %v231
        %262 = vmatprep.subr.mxu0 0.0
        %263 = vmatpush1.msra.mxu0 %v230
        %264 = vmatprep.subr.mxu0 0.0
        %265 = vmatpush1.msra.mxu0 %v229
        %266 = vmatprep.subr.mxu0 0.0
        %267 = vmatpush1.msra.mxu0 %v228
        %268 = vmatprep.subr.mxu0 0.0
        %269 = vmatpush1.msra.mxu0 %v227
        %270 = vmatprep.subr.mxu0 0.0
        %271 = vmatpush1.msra.mxu0 %v226
        %272 = vmatprep.subr.mxu0 0.0
        %273 = vmatpush1.msra.mxu0 %v225
        %274 = vmatprep.subr.mxu0 0.0
        %275 = vmatpush1.msra.mxu0 %v224
        %276 = vmatprep.subr.mxu0 0.0
        %277 = vmatpush1.msra.mxu0 %v223
        %278 = vmatprep.subr.mxu0 0.0
        %279 = vmatpush2.msra.mxu0 0.0
        %280 = vmatprep.subr.mxu0 0.0
        %281 = vmatpush2.msra.mxu0 0.0
        %282 = vmatprep.subr.mxu0 0.0
        %283 = vmatpush2.msra.mxu0 0.0
        %284 = vmatprep.subr.mxu0 0.0
        %285 = vmatpush2.msra.mxu0 0.0
        %286 = vmatprep.subr.mxu0 0.0
        %287 = vmatpush2.msra.mxu0 0.0
        %288 = vmatprep.subr.mxu0 0.0
        %289 = vmatpush2.msra.mxu0 0.0
        %290 = vmatprep.subr.mxu0 0.0
        %291 = vmatpush2.msra.mxu0 0.0
        %292 = vmatprep.subr.mxu0 0.0
        %293 = vmatpush2.msra.mxu0 0.0
        %294 = vmatprep.subr.mxu0 0.0
        %295 = vmatpush2.msra.mxu0 0.0
        %296 = vmatprep.subr.mxu0 0.0
        %297 = vmatpush2.msra.mxu0 0.0
        %298 = vmatprep.subr.mxu0 0.0
        %299 = vmatpush2.msra.mxu0 0.0
        %300 = vmatprep.subr.mxu0 0.0
        %301 = vmatpush2.msra.mxu0 0.0
        %302 = vmatprep.subr.mxu0 0.0
        %303 = vmatpush2.msra.mxu0 0.0
        %304 = vmatprep.subr.mxu0 0.0
        %305 = vmatpush2.msra.mxu0 0.0
        %306 = vmatprep.subr.mxu0 0.0
        %307 = vmatpush2.msra.mxu0 0.0
        %308 = vmatprep.subr.mxu0 0.0
        %309 = vmatpush2.msra.mxu0 0.0
        %310 = vmatprep.mubr.f32.mxu0 0.0
        %311 = vmatmul.mubr.f32.gmra.mxu0 %v222
        %v312 = vpop.f32.mrf.mxu0
        %v313 = vadd.f32 %v244, %v312
        %v314 = vpop.f32.mrf.mxu0
        %315 = vdwg.mxu0
        %316 = vst [vmem:[%s201] sm:$0xff] %v313
        %s317 = sand.u32 %s119, 1
        %s318 = scalar_lea.sflag [#allocation8], %s317
        %s319 = sand.u32 %s119, 1
        %s320 = smul.addr %s319, 8
        %s321 = scalar_lea.vmem [#allocation7], %s320
        // Predicated region
        $region33: #{patch_embedding.2} parent=31 // pred_check
          %p322 = pneg %p129
        $region34: #{patch_embedding.2} parent=31 // pred_check_branch
          %324 = sbr.rel (%p322) target = $region36
        $region35: #{patch_embedding.2} parent=31 // pred_region
          %s326 = ssub.s32 128, 128
          %327 = vsyncadd %s318, %s326
          %s328 = sadd.s32 %s23, %s24
          %s329 = smul.addr %s328, 128
          %s330 = scalar_lea.hbm %s4, %s329
          %s332 = sshll.u32 %s321, 4
          %s333 = int_to_ptr.vmem [resolvable:$true] %s332
          %335 = dma.vmem_to_hbm [thread:$0]  %s333, 128, %s330, %s318
        $region36: #{patch_embedding.2} parent=31 // pred_fallthru
          _
      $region32: #{patch_embedding.2} parent=5 // pred_fallthru
        _
      %p336 = scmp.le.s32.totalorder 2, %s14
      // Predicated region
      $region37: #{patch_embedding.2} parent=5 // pred_check
        %p337 = pneg %p336
      $region38: #{patch_embedding.2} parent=5 // pred_check_branch
        %339 = sbr.rel (%p337) target = $region40
      $region39: #{patch_embedding.2} parent=5 // pred_region
        %s340 = ssub.s32 %s14, 2
        // Predicated region
        $region41: #{patch_embedding.2} parent=39 // pred_check
          %p341 = pneg %p135
        $region42: #{patch_embedding.2} parent=39 // pred_check_branch
          %343 = sbr.rel (%p341) target = $region44
        $region43: #{patch_embedding.2} parent=39 // pred_region
          %s344 = sand.u32 %s120, 1
          %s345 = scalar_lea.sflag [#allocation8], %s344
          %s346 = sand.u32 %s120, 1
          %s347 = smul.addr %s346, 8
          %s348 = scalar_lea.vmem [#allocation7], %s347
          %349 = dma.done %s345, 128
        $region44: #{patch_embedding.2} parent=39 // pred_fallthru
          _
      $region40: #{patch_embedding.2} parent=5 // pred_fallthru
        _
    $region6: #{patch_embedding.2} parent=1 // loop_footer
      %s18 = sadd.s32 1, %s14
    $region7: #{patch_embedding.2} parent=1 // loop_footer_branch
      %13 = sbr.rel target = $region3
    $region8: #{patch_embedding.2} parent=1 // loop_exit
      _
    %350 = vsyncpa [#allocation8], 1
    %s351 = scalar_lea.sflag [#allocation8], 1
    %352 = vsyncpa %s351, 1

</llo_original>
